<compile_context>
chip_gen: v6e
topology: v6e:2x2x1
jax: 0.10.0
libtpu: 0.0.40
codegen_flags: <defaults>
</compile_context>

<pallas_src>
import functools

import jax
import jax.numpy as jnp
from jax.experimental import pallas as pl
from jax.experimental.pallas import tpu as pltpu

ALPHA_EPS = 1e-4
BETA_EPS = 1e-4
RESI_MIN = 1e-4
RESI_MAX = 1000.0

LANES = 128
SUB_ROWS = 512           # compute sub-chunk rows (bounds live temporaries)
MAX_TILE_ROWS = 2048     # 2048 * 128 * 4B = 1 MiB per stream per buffer

# ---------------------------------------------------------------------------
# Lanczos lgamma (x > 0) in single-rational form with sqrt(2*pi) folded in:
#   lgamma(x) = (x + 0.5)*log(x + 5.5) - (x + 5.5) + log(N(x)/D(x))
# where N(x)/D(x) == sqrt(2*pi) * (c0 + sum_k c_k/(x+k)) / x over a common
# denominator.  Coefficients are precomputed in double precision at import
# time; runtime cost is two Horner chains + 1 divide + 2 logs per call.
# ---------------------------------------------------------------------------
_LANCZOS_C0 = 1.000000000190015
_LANCZOS_COF = (
    76.18009172947146,
    -86.50532032941677,
    24.01409824083091,
    -1.231739572450155,
    0.1208650973866179e-2,
    -0.5395239384953e-5,
)
_SQRT_2PI = 2.5066282746310005


def _poly_mul(a, b):
    out = [0.0] * (len(a) + len(b) - 1)
    for i, ai in enumerate(a):
        for j, bj in enumerate(b):
            out[i + j] += ai * bj
    return out


def _lanczos_rational_coeffs():
    # full(x) = prod_{k=1..6} (x + k), ascending coefficients
    full = [1.0]
    for k in range(1, 7):
        full = _poly_mul(full, [float(k), 1.0])
    num = [_LANCZOS_C0 * v for v in full]
    for idx, c in enumerate(_LANCZOS_COF, start=1):
        p = [1.0]
        for k in range(1, 7):
            if k != idx:
                p = _poly_mul(p, [float(k), 1.0])
        for i, v in enumerate(p):
            num[i] += c * v
    num = [_SQRT_2PI * v for v in num]    # fold sqrt(2*pi) into the numerator
    den = [0.0] + full                    # D(x) = x * full(x)
    return tuple(num), tuple(den)


_LG_NUM, _LG_DEN = _lanczos_rational_coeffs()


def _horner(coeffs_ascending, x):
    acc = coeffs_ascending[-1]
    for c in reversed(coeffs_ascending[:-1]):
        acc = acc * x + c
    return acc


def _lgamma(x):
    """log(Gamma(x)) for x > 0; one divide + two logs on the EUP."""
    xp = x + 5.5
    ratio = _horner(_LG_NUM, x) / _horner(_LG_DEN, x)
    return (x + 0.5) * jnp.log(xp) - xp + jnp.log(ratio)


# ---------------------------------------------------------------------------
# Kernel factory: all geometry (tile/sub-chunk sizes, element count) is static
# and baked into the traced kernel.
# ---------------------------------------------------------------------------
def _make_kernel(tile_rows, sub_rows, num_tiles, q_rows, r_lane, needs_mask):
    n_chunks = tile_rows // sub_rows
    last = num_tiles - 1
    last_base_row = last * tile_rows      # only the last tile is ever ragged

    def tile_body(masked, mean_ref, ooa_ref, beta_ref, tgt_ref, theta_ref):
        acc = jnp.zeros((8, LANES), jnp.float32)
        # Static Python loop == fully-unrolled inner loop; slice starts are
        # compile-time constants so every sub-chunk access is a free view.
        for c in range(n_chunks):
            sl = pl.ds(c * sub_rows, sub_rows)

            ooa1 = ooa_ref[sl, :] + ALPHA_EPS
            beta1 = beta_ref[sl, :] + BETA_EPS

            resi = jnp.abs(mean_ref[sl, :] - tgt_ref[sl, :])
            resi = jnp.clip(resi * ooa1 * beta1, RESI_MIN, RESI_MAX)

            inv_beta = 1.0 / beta1
            lg_down = _lgamma(inv_beta)            # == lgamma_beta in torch
            lg_up = _lgamma(3.0 * inv_beta)

            # torch: theta = one_over_alpha1**2 * exp(lgamma_up / lgamma_down)
            # (exact divide: lgamma_down can approach 0 for beta near 1)
            theta_ref[sl, :] = ooa1 * ooa1 * jnp.exp(lg_up / lg_down)

            # TODO(synk): the torch module's host-side NaN-check prints are
            # not reproduced inside the kernel (pure debug side effects).

            # fused log: -log(ooa1) - log(beta1) == -log(ooa1 * beta1)
            l = resi + lg_down - jnp.log(ooa1 * beta1)

            if masked:
                # Padding / out-of-bounds rows exist only in the last tile.
                # Compare in (row, lane) space (no flat-index int32 overflow)
                # and use a select so garbage NaN/inf never reaches the sum.
                row = (last_base_row + c * sub_rows
                       + jax.lax.broadcasted_iota(jnp.int32, l.shape, 0))
                lane = jax.lax.broadcasted_iota(jnp.int32, l.shape, 1)
                valid = (row < q_rows) | ((row == q_rows) & (lane < r_lane))
                l = jnp.where(valid, l, 0.0)

            # (sub_rows,128) -> (8,128) partial sum: pure VPU adds, no XLU work
            acc = acc + l.reshape(sub_rows // 8, 8, LANES).sum(axis=0)
        return acc

    def kernel(mean_ref, ooa_ref, beta_ref, tgt_ref, theta_ref, psum_ref):
        if not needs_mask:
            psum_ref[...] = tile_body(False, mean_ref, ooa_ref, beta_ref,
                                      tgt_ref, theta_ref)
        else:
            i = pl.program_id(0)

            @pl.when(i < last)
            def _():
                psum_ref[...] = tile_body(False, mean_ref, ooa_ref, beta_ref,
                                          tgt_ref, theta_ref)

            @pl.when(i == last)
            def _():
                psum_ref[...] = tile_body(True, mean_ref, ooa_ref, beta_ref,
                                          tgt_ref, theta_ref)

    return kernel


# ---------------------------------------------------------------------------
# Wrapper
# ---------------------------------------------------------------------------
def _round_up(x, m):
    return -(-x // m) * m


@functools.partial(jax.jit, static_argnames=("reduction",))
def gen_gauss_loss(mean, one_over_alpha, beta, target, reduction="mean"):
    if reduction not in ("mean", "sum"):
        raise ValueError("Reduction not supported")

    orig_shape = mean.shape
    n = mean.size

    rows = -(-n // LANES)                  # ceil(n / 128)
    rows8 = _round_up(rows, 8)             # sublane multiple (minimal pad)
    pad = rows8 * LANES - n                # < 1024 elements, 0 when aligned

    # --- tile / grid selection (all static Python ints) -------------------
    num_tiles = max(1, -(-rows8 // MAX_TILE_ROWS))
    if rows8 >= 16:
        num_tiles = _round_up(num_tiles, 2)      # keep both v7x TCs busy
    tile_rows = _round_up(-(-rows8 // num_tiles), 8)
    if tile_rows > SUB_ROWS:
        tile_rows = _round_up(tile_rows, SUB_ROWS)   # sub-chunkable compute
        sub_rows = SUB_ROWS
    else:
        sub_rows = tile_rows
    num_tiles = -(-rows8 // tile_rows)               # last tile may be ragged

    q_rows, r_lane = divmod(n, LANES)
    needs_mask = (num_tiles * tile_rows != rows8) or (pad != 0)

    def prep(x):
        x = x.reshape(-1).astype(jnp.float32)
        if pad:
            # only for ragged inputs; at most 1023 padded elements
            x = jnp.pad(x, (0, pad))
        return x.reshape(rows8, LANES)

    m2, a2, b2, t2 = (prep(x) for x in (mean, one_over_alpha, beta, target))

    blk_full = pl.BlockSpec((tile_rows, LANES), lambda i: (i, 0))
    blk_psum = pl.BlockSpec((8, LANES), lambda i: (i, 0))

    kernel = _make_kernel(tile_rows, sub_rows, num_tiles, q_rows, r_lane,
                          needs_mask)

    theta2, psums = pl.pallas_call(
        kernel,
        out_shape=(
            # theta is written with full blocks (no partial output writeback)
            jax.ShapeDtypeStruct((num_tiles * tile_rows, LANES), jnp.float32),
            jax.ShapeDtypeStruct((num_tiles * 8, LANES), jnp.float32),
        ),
        grid=(num_tiles,),
        in_specs=[blk_full, blk_full, blk_full, blk_full],
        out_specs=(blk_full, blk_psum),
        compiler_params=pltpu.CompilerParams(
            dimension_semantics=("parallel",),     # no cross-step carry
            vmem_limit_bytes=48 * 1024 * 1024,
        ),
    )(m2, a2, b2, t2)

    theta = theta2.reshape(-1)[:n].reshape(orig_shape)
    total = jnp.sum(psums)                         # final reduce in plain JAX
    if reduction == "mean":
        return total / n, theta
    return total, theta


# ---------------------------------------------------------------------------
# Pure-JAX reference (uses jax.lax.lgamma) for correctness checking.
# ---------------------------------------------------------------------------
def _reference(mean, one_over_alpha, beta, target):
    ooa1 = one_over_alpha + ALPHA_EPS
    beta1 = beta + BETA_EPS
    resi = jnp.abs(mean - target)
    resi = jnp.clip(resi * ooa1 * beta1, RESI_MIN, RESI_MAX)
    log_ooa = jnp.log(ooa1)
    log_beta = jnp.log(beta1)
    lg_down = jax.lax.lgamma(1.0 / beta1)
    lg_up = jax.lax.lgamma(3.0 / beta1)
    theta = ooa1 ** 2 * jnp.exp(lg_up / lg_down)
    l = resi - log_ooa + lg_down - log_beta
    return l.mean(), theta


if __name__ == "__main__":
    key = jax.random.PRNGKey(0)
    k1, k2, k3, k4 = jax.random.split(key, 4)
    shape = (2, 4, 16, 16)

    mean = jax.random.normal(k1, shape, dtype=jnp.float32)
    target = jax.random.normal(k2, shape, dtype=jnp.float32)
    # positive scale / shape parameters, kept away from lgamma zeros so the
    # exp(lgamma ratio) is numerically well-posed (same caveat as the torch op)
    one_over_alpha = jax.random.uniform(k3, shape, jnp.float32, 0.5, 2.0)
    beta = jax.random.uniform(k4, shape, jnp.float32, 2.5, 4.0)

    loss, theta = gen_gauss_loss(mean, one_over_alpha, beta, target,
                                 reduction="mean")
    jax.block_until_ready((loss, theta))

    loss_ref, theta_ref = _reference(mean, one_over_alpha, beta, target)
    assert jnp.allclose(loss, loss_ref, rtol=1e-3, atol=1e-3), (loss, loss_ref)
    assert jnp.allclose(theta, theta_ref, rtol=1e-3, atol=1e-3)

    print("KERNEL_OK")
</pallas_src>

<mosaic_0001>
module attributes {stable_mosaic.version = 11 : i64} {
  func.func @kernel(%arg0: i32, %arg1: memref<8x128xf32, #tpu.memory_space<vmem>>, %arg2: memref<8x128xf32, #tpu.memory_space<vmem>>, %arg3: memref<8x128xf32, #tpu.memory_space<vmem>>, %arg4: memref<8x128xf32, #tpu.memory_space<vmem>>, %arg5: memref<8x128xf32, #tpu.memory_space<vmem>>, %arg6: memref<8x128xf32, #tpu.memory_space<vmem>>) attributes {dimension_semantics = [#tpu.dimension_semantics<parallel>], iteration_bounds = array<i64: 2>, scalar_prefetch = 0 : i64, scratch_operands = 0 : i64, tpu.core_type = #tpu.core_type<tc>, window_params = [{transform_indices = @transform_0, window_bounds = array<i64: 8, 128>}, {transform_indices = @transform_1, window_bounds = array<i64: 8, 128>}, {transform_indices = @transform_2, window_bounds = array<i64: 8, 128>}, {transform_indices = @transform_3, window_bounds = array<i64: 8, 128>}, {transform_indices = @transform_4, window_bounds = array<i64: 8, 128>}, {transform_indices = @transform_5, window_bounds = array<i64: 8, 128>}]} {
    %cst = arith.constant 0.000000e+00 : f32
    %0 = vector.broadcast %cst : f32 to vector<8x128xf32>
    %c0 = arith.constant 0 : index
    %c0_0 = arith.constant 0 : index
    %1 = vector.load %arg2[%c0, %c0_0] : memref<8x128xf32, #tpu.memory_space<vmem>>, vector<8x128xf32>
    %cst_1 = arith.constant 9.99999974E-5 : f32
    %2 = vector.broadcast %cst_1 : f32 to vector<8x128xf32>
    %3 = arith.addf %1, %2 : vector<8x128xf32>
    %c0_2 = arith.constant 0 : index
    %c0_3 = arith.constant 0 : index
    %4 = vector.load %arg3[%c0_2, %c0_3] : memref<8x128xf32, #tpu.memory_space<vmem>>, vector<8x128xf32>
    %cst_4 = arith.constant 9.99999974E-5 : f32
    %5 = vector.broadcast %cst_4 : f32 to vector<8x128xf32>
    %6 = arith.addf %4, %5 : vector<8x128xf32>
    %c0_5 = arith.constant 0 : index
    %c0_6 = arith.constant 0 : index
    %7 = vector.load %arg1[%c0_5, %c0_6] : memref<8x128xf32, #tpu.memory_space<vmem>>, vector<8x128xf32>
    %c0_7 = arith.constant 0 : index
    %c0_8 = arith.constant 0 : index
    %8 = vector.load %arg4[%c0_7, %c0_8] : memref<8x128xf32, #tpu.memory_space<vmem>>, vector<8x128xf32>
    %9 = arith.subf %7, %8 : vector<8x128xf32>
    %10 = math.absf %9 : vector<8x128xf32>
    %11 = arith.mulf %10, %3 : vector<8x128xf32>
    %12 = arith.mulf %11, %6 : vector<8x128xf32>
    %cst_9 = arith.constant 9.99999974E-5 : f32
    %cst_10 = arith.constant 1.000000e+03 : f32
    %13 = vector.broadcast %cst_9 : f32 to vector<8x128xf32>
    %14 = arith.maximumf %13, %12 : vector<8x128xf32>
    %15 = vector.broadcast %cst_10 : f32 to vector<8x128xf32>
    %16 = arith.minimumf %15, %14 : vector<8x128xf32>
    %cst_11 = arith.constant 1.000000e+00 : f32
    %17 = vector.broadcast %cst_11 : f32 to vector<8x128xf32>
    %18 = arith.divf %17, %6 : vector<8x128xf32>
    %cst_12 = arith.constant 5.500000e+00 : f32
    %19 = vector.broadcast %cst_12 : f32 to vector<8x128xf32>
    %20 = arith.addf %18, %19 : vector<8x128xf32>
    %cst_13 = arith.constant 2.50662827 : f32
    %21 = vector.broadcast %cst_13 : f32 to vector<8x128xf32>
    %22 = arith.mulf %21, %18 : vector<8x128xf32>
    %cst_14 = arith.constant 83.8676071 : f32
    %23 = vector.broadcast %cst_14 : f32 to vector<8x128xf32>
    %24 = arith.addf %22, %23 : vector<8x128xf32>
    %25 = arith.mulf %24, %18 : vector<8x128xf32>
    %cst_15 = arith.constant 1168.92651 : f32
    %26 = vector.broadcast %cst_15 : f32 to vector<8x128xf32>
    %27 = arith.addf %25, %26 : vector<8x128xf32>
    %28 = arith.mulf %27, %18 : vector<8x128xf32>
    %cst_16 = arith.constant 8687.24511 : f32
    %29 = vector.broadcast %cst_16 : f32 to vector<8x128xf32>
    %30 = arith.addf %28, %29 : vector<8x128xf32>
    %31 = arith.mulf %30, %18 : vector<8x128xf32>
    %cst_17 = arith.constant 36308.2969 : f32
    %32 = vector.broadcast %cst_17 : f32 to vector<8x128xf32>
    %33 = arith.addf %31, %32 : vector<8x128xf32>
    %34 = arith.mulf %33, %18 : vector<8x128xf32>
    %cst_18 = arith.constant 80916.625 : f32
    %35 = vector.broadcast %cst_18 : f32 to vector<8x128xf32>
    %36 = arith.addf %34, %35 : vector<8x128xf32>
    %37 = arith.mulf %36, %18 : vector<8x128xf32>
    %cst_19 = arith.constant 75122.6328 : f32
    %38 = vector.broadcast %cst_19 : f32 to vector<8x128xf32>
    %39 = arith.addf %37, %38 : vector<8x128xf32>
    %cst_20 = arith.constant 1.000000e+00 : f32
    %40 = vector.broadcast %cst_20 : f32 to vector<8x128xf32>
    %41 = arith.mulf %40, %18 : vector<8x128xf32>
    %cst_21 = arith.constant 2.100000e+01 : f32
    %42 = vector.broadcast %cst_21 : f32 to vector<8x128xf32>
    %43 = arith.addf %41, %42 : vector<8x128xf32>
    %44 = arith.mulf %43, %18 : vector<8x128xf32>
    %cst_22 = arith.constant 1.750000e+02 : f32
    %45 = vector.broadcast %cst_22 : f32 to vector<8x128xf32>
    %46 = arith.addf %44, %45 : vector<8x128xf32>
    %47 = arith.mulf %46, %18 : vector<8x128xf32>
    %cst_23 = arith.constant 7.350000e+02 : f32
    %48 = vector.broadcast %cst_23 : f32 to vector<8x128xf32>
    %49 = arith.addf %47, %48 : vector<8x128xf32>
    %50 = arith.mulf %49, %18 : vector<8x128xf32>
    %cst_24 = arith.constant 1.624000e+03 : f32
    %51 = vector.broadcast %cst_24 : f32 to vector<8x128xf32>
    %52 = arith.addf %50, %51 : vector<8x128xf32>
    %53 = arith.mulf %52, %18 : vector<8x128xf32>
    %cst_25 = arith.constant 1.764000e+03 : f32
    %54 = vector.broadcast %cst_25 : f32 to vector<8x128xf32>
    %55 = arith.addf %53, %54 : vector<8x128xf32>
    %56 = arith.mulf %55, %18 : vector<8x128xf32>
    %cst_26 = arith.constant 7.200000e+02 : f32
    %57 = vector.broadcast %cst_26 : f32 to vector<8x128xf32>
    %58 = arith.addf %56, %57 : vector<8x128xf32>
    %59 = arith.mulf %58, %18 : vector<8x128xf32>
    %cst_27 = arith.constant 0.000000e+00 : f32
    %60 = vector.broadcast %cst_27 : f32 to vector<8x128xf32>
    %61 = arith.addf %59, %60 : vector<8x128xf32>
    %62 = arith.divf %39, %61 : vector<8x128xf32>
    %cst_28 = arith.constant 5.000000e-01 : f32
    %63 = vector.broadcast %cst_28 : f32 to vector<8x128xf32>
    %64 = arith.addf %18, %63 : vector<8x128xf32>
    %65 = math.log %20 : vector<8x128xf32>
    %66 = arith.mulf %64, %65 : vector<8x128xf32>
    %67 = arith.subf %66, %20 : vector<8x128xf32>
    %68 = math.log %62 : vector<8x128xf32>
    %69 = arith.addf %67, %68 : vector<8x128xf32>
    %cst_29 = arith.constant 3.000000e+00 : f32
    %70 = vector.broadcast %cst_29 : f32 to vector<8x128xf32>
    %71 = arith.mulf %70, %18 : vector<8x128xf32>
    %cst_30 = arith.constant 5.500000e+00 : f32
    %72 = vector.broadcast %cst_30 : f32 to vector<8x128xf32>
    %73 = arith.addf %71, %72 : vector<8x128xf32>
    %cst_31 = arith.constant 2.50662827 : f32
    %74 = vector.broadcast %cst_31 : f32 to vector<8x128xf32>
    %75 = arith.mulf %74, %71 : vector<8x128xf32>
    %cst_32 = arith.constant 83.8676071 : f32
    %76 = vector.broadcast %cst_32 : f32 to vector<8x128xf32>
    %77 = arith.addf %75, %76 : vector<8x128xf32>
    %78 = arith.mulf %77, %71 : vector<8x128xf32>
    %cst_33 = arith.constant 1168.92651 : f32
    %79 = vector.broadcast %cst_33 : f32 to vector<8x128xf32>
    %80 = arith.addf %78, %79 : vector<8x128xf32>
    %81 = arith.mulf %80, %71 : vector<8x128xf32>
    %cst_34 = arith.constant 8687.24511 : f32
    %82 = vector.broadcast %cst_34 : f32 to vector<8x128xf32>
    %83 = arith.addf %81, %82 : vector<8x128xf32>
    %84 = arith.mulf %83, %71 : vector<8x128xf32>
    %cst_35 = arith.constant 36308.2969 : f32
    %85 = vector.broadcast %cst_35 : f32 to vector<8x128xf32>
    %86 = arith.addf %84, %85 : vector<8x128xf32>
    %87 = arith.mulf %86, %71 : vector<8x128xf32>
    %cst_36 = arith.constant 80916.625 : f32
    %88 = vector.broadcast %cst_36 : f32 to vector<8x128xf32>
    %89 = arith.addf %87, %88 : vector<8x128xf32>
    %90 = arith.mulf %89, %71 : vector<8x128xf32>
    %cst_37 = arith.constant 75122.6328 : f32
    %91 = vector.broadcast %cst_37 : f32 to vector<8x128xf32>
    %92 = arith.addf %90, %91 : vector<8x128xf32>
    %cst_38 = arith.constant 1.000000e+00 : f32
    %93 = vector.broadcast %cst_38 : f32 to vector<8x128xf32>
    %94 = arith.mulf %93, %71 : vector<8x128xf32>
    %cst_39 = arith.constant 2.100000e+01 : f32
    %95 = vector.broadcast %cst_39 : f32 to vector<8x128xf32>
    %96 = arith.addf %94, %95 : vector<8x128xf32>
    %97 = arith.mulf %96, %71 : vector<8x128xf32>
    %cst_40 = arith.constant 1.750000e+02 : f32
    %98 = vector.broadcast %cst_40 : f32 to vector<8x128xf32>
    %99 = arith.addf %97, %98 : vector<8x128xf32>
    %100 = arith.mulf %99, %71 : vector<8x128xf32>
    %cst_41 = arith.constant 7.350000e+02 : f32
    %101 = vector.broadcast %cst_41 : f32 to vector<8x128xf32>
    %102 = arith.addf %100, %101 : vector<8x128xf32>
    %103 = arith.mulf %102, %71 : vector<8x128xf32>
    %cst_42 = arith.constant 1.624000e+03 : f32
    %104 = vector.broadcast %cst_42 : f32 to vector<8x128xf32>
    %105 = arith.addf %103, %104 : vector<8x128xf32>
    %106 = arith.mulf %105, %71 : vector<8x128xf32>
    %cst_43 = arith.constant 1.764000e+03 : f32
    %107 = vector.broadcast %cst_43 : f32 to vector<8x128xf32>
    %108 = arith.addf %106, %107 : vector<8x128xf32>
    %109 = arith.mulf %108, %71 : vector<8x128xf32>
    %cst_44 = arith.constant 7.200000e+02 : f32
    %110 = vector.broadcast %cst_44 : f32 to vector<8x128xf32>
    %111 = arith.addf %109, %110 : vector<8x128xf32>
    %112 = arith.mulf %111, %71 : vector<8x128xf32>
    %cst_45 = arith.constant 0.000000e+00 : f32
    %113 = vector.broadcast %cst_45 : f32 to vector<8x128xf32>
    %114 = arith.addf %112, %113 : vector<8x128xf32>
    %115 = arith.divf %92, %114 : vector<8x128xf32>
    %cst_46 = arith.constant 5.000000e-01 : f32
    %116 = vector.broadcast %cst_46 : f32 to vector<8x128xf32>
    %117 = arith.addf %71, %116 : vector<8x128xf32>
    %118 = math.log %73 : vector<8x128xf32>
    %119 = arith.mulf %117, %118 : vector<8x128xf32>
    %120 = arith.subf %119, %73 : vector<8x128xf32>
    %121 = math.log %115 : vector<8x128xf32>
    %122 = arith.addf %120, %121 : vector<8x128xf32>
    %123 = arith.mulf %3, %3 : vector<8x128xf32>
    %124 = arith.divf %122, %69 : vector<8x128xf32>
    %125 = math.exp %124 : vector<8x128xf32>
    %126 = arith.mulf %123, %125 : vector<8x128xf32>
    %c0_47 = arith.constant 0 : index
    %c0_48 = arith.constant 0 : index
    %127 = vector.load %arg5[%c0_47, %c0_48] : memref<8x128xf32, #tpu.memory_space<vmem>>, vector<8x128xf32>
    tpu.vector_store %arg5[%c0_47, %c0_48], %126 {strides = array<i32>} : memref<8x128xf32, #tpu.memory_space<vmem>>, vector<8x128xf32>,
    %128 = arith.addf %16, %69 : vector<8x128xf32>
    %129 = arith.mulf %3, %6 : vector<8x128xf32>
    %130 = math.log %129 : vector<8x128xf32>
    %131 = arith.subf %128, %130 : vector<8x128xf32>
    %132 = vector.shape_cast %131 : vector<8x128xf32> to vector<1x8x128xf32>
    %cst_49 = arith.constant dense<0.000000e+00> : vector<8x128xf32>
    %133 = vector.multi_reduction <add>, %132, %cst_49 [0] : vector<1x8x128xf32> to vector<8x128xf32>
    %134 = arith.addf %0, %133 : vector<8x128xf32>
    %c0_50 = arith.constant 0 : index
    %c0_51 = arith.constant 0 : index
    %135 = vector.load %arg6[%c0_50, %c0_51] : memref<8x128xf32, #tpu.memory_space<vmem>>, vector<8x128xf32>
    tpu.vector_store %arg6[%c0_50, %c0_51], %134 {strides = array<i32>} : memref<8x128xf32, #tpu.memory_space<vmem>>, vector<8x128xf32>,
    return
  }
  func.func @transform_0(%arg0: i32) -> (i32, i32) {
    %c0_i32 = arith.constant 0 : i32
    %c0_i32_0 = arith.constant 0 : i32
    return %arg0, %c0_i32 : i32, i32
  }
  func.func @transform_1(%arg0: i32) -> (i32, i32) {
    %c0_i32 = arith.constant 0 : i32
    %c0_i32_0 = arith.constant 0 : i32
    return %arg0, %c0_i32 : i32, i32
  }
  func.func @transform_2(%arg0: i32) -> (i32, i32) {
    %c0_i32 = arith.constant 0 : i32
    %c0_i32_0 = arith.constant 0 : i32
    return %arg0, %c0_i32 : i32, i32
  }
  func.func @transform_3(%arg0: i32) -> (i32, i32) {
    %c0_i32 = arith.constant 0 : i32
    %c0_i32_0 = arith.constant 0 : i32
    return %arg0, %c0_i32 : i32, i32
  }
  func.func @transform_4(%arg0: i32) -> (i32, i32) {
    %c0_i32 = arith.constant 0 : i32
    %c0_i32_0 = arith.constant 0 : i32
    return %arg0, %c0_i32 : i32, i32
  }
  func.func @transform_5(%arg0: i32) -> (i32, i32) {
    %c0_i32 = arith.constant 0 : i32
    %c0_i32_0 = arith.constant 0 : i32
    return %arg0, %c0_i32 : i32, i32
  }
}

</mosaic_0001>

<llo_original>
// kernel: gen_gauss_loss.1
$region0: #{gen_gauss_loss.1}
  #allocation0 [shape = 'u32[]', space=smem, size = 0x4, offset = 0x4, fixed_abs, tag = 'smem constant byte address 0x4 - core index']
  #allocation1 [shape = 'u32[144,128]{1,0:T(1,128)}', space=vmem, size = 0x12000, scoped, tag = 'internal scratch']
  %s0 = inlined_call_operand.vmem [shape: f32[16,128], index: 0, kind: input, shape index: {}]
  %s1 = inlined_call_operand.vmem [shape: f32[16,128], index: 1, kind: input, shape index: {}]
  %s2 = inlined_call_operand.vmem [shape: f32[16,128], index: 2, kind: input, shape index: {}]
  %s3 = inlined_call_operand.vmem [shape: f32[16,128], index: 3, kind: input, shape index: {}]
  %s4 = inlined_call_operand.vmem [shape: f32[16,128], index: 4, kind: output, shape index: {0}]
  %s5 = inlined_call_operand.vmem [shape: f32[16,128], index: 5, kind: output, shape index: {1}]
  %6 = xla_tuple %s4, %s5
  %s7 = sld [smem:[#allocation0]]
  $region57: #{gen_gauss_loss.1} parent=0
    _
  %s9 = ssub.s32 1, %s7
  %s10 = scalar_select 0, %s9, %s7
  loop: start=0, step=1, limit=4
  $region2: #{gen_gauss_loss.1} parent=0 // loop_pre_header
    _
  $region3: #{gen_gauss_loss.1} parent=0 // loop_header
    %s12 = sphi 0, %s16
    %p13 = scmp.ge.s32.totalorder %s12, 4
    %s22 = sphi 0, %s24
    %s25 = sphi 0, %s22
    %s26 = sphi 0, %s25
    %s42 = sphi 0, %s26
    %s48 = sphi 0, %s50
    %s51 = sphi 0, %s48
    %s52 = sphi 0, %s51
    %s68 = sphi 0, %s52
    %s74 = sphi 0, %s76
    %s77 = sphi 0, %s74
    %s78 = sphi 0, %s77
    %s94 = sphi 0, %s78
    %s100 = sphi 0, %s102
    %s103 = sphi 0, %s100
    %s104 = sphi 0, %s103
    %s120 = sphi 0, %s104
    %s126 = sphi 0, %s128
    %s129 = sphi 0, %s126
    %s130 = sphi 0, %s129
    %s146 = sphi 0, %s130
    %s152 = sphi 0, %s154
    %s155 = sphi 0, %s152
    %s156 = sphi 0, %s155
    %s172 = sphi 0, %s156
  $region4: #{gen_gauss_loss.1} parent=0 // loop_header_branch
    %15 = sbr.rel (%p13) target = $region8
  $region5: #{gen_gauss_loss.1} parent=0 // loop_body
    %s17 = ssub.s32 %s12, 1
    %s18 = ssub.s32 %s12, 2
    %s19 = sadd.s32 %s12, 1
    %s20 = ssub.s32 %s12, %s19
    %p21 = scmp.eq.s32.totalorder %s20, 0
    %s23 = sadd.s32 %s22, 1
    %s24 = scalar_select %p21, %s22, %s23
    %p27 = pneg %p21
    %p28 = scmp.eq.s32.totalorder %s12, 1
    %p29 = por %p27, %p28
    %p30 = scmp.ne.s32.totalorder %s22, %s25
    %p31 = scmp.eq.s32.totalorder %s12, 0
    %p32 = por %p30, %p31
    %p33 = scmp.ne.s32.totalorder %s22, %s25
    %p34 = scmp.eq.s32.totalorder %s17, 1
    %p35 = por %p33, %p34
    %p36 = scmp.ne.s32.totalorder %s25, %s26
    %p37 = scmp.eq.s32.totalorder %s17, 0
    %p38 = por %p36, %p37
    %p39 = scmp.ne.s32.totalorder %s25, %s26
    %p40 = scmp.eq.s32.totalorder %s18, 1
    %p41 = por %p39, %p40
    %p43 = scmp.ne.s32.totalorder %s26, %s42
    %p44 = scmp.eq.s32.totalorder %s18, 0
    %p45 = por %p43, %p44
    %s46 = ssub.s32 %s12, %s19
    %p47 = scmp.eq.s32.totalorder %s46, 0
    %s49 = sadd.s32 %s48, 1
    %s50 = scalar_select %p47, %s48, %s49
    %p53 = pneg %p47
    %p54 = scmp.eq.s32.totalorder %s12, 1
    %p55 = por %p53, %p54
    %p56 = scmp.ne.s32.totalorder %s48, %s51
    %p57 = scmp.eq.s32.totalorder %s12, 0
    %p58 = por %p56, %p57
    %p59 = scmp.ne.s32.totalorder %s48, %s51
    %p60 = scmp.eq.s32.totalorder %s17, 1
    %p61 = por %p59, %p60
    %p62 = scmp.ne.s32.totalorder %s51, %s52
    %p63 = scmp.eq.s32.totalorder %s17, 0
    %p64 = por %p62, %p63
    %p65 = scmp.ne.s32.totalorder %s51, %s52
    %p66 = scmp.eq.s32.totalorder %s18, 1
    %p67 = por %p65, %p66
    %p69 = scmp.ne.s32.totalorder %s52, %s68
    %p70 = scmp.eq.s32.totalorder %s18, 0
    %p71 = por %p69, %p70
    %s72 = ssub.s32 %s12, %s19
    %p73 = scmp.eq.s32.totalorder %s72, 0
    %s75 = sadd.s32 %s74, 1
    %s76 = scalar_select %p73, %s74, %s75
    %p79 = pneg %p73
    %p80 = scmp.eq.s32.totalorder %s12, 1
    %p81 = por %p79, %p80
    %p82 = scmp.ne.s32.totalorder %s74, %s77
    %p83 = scmp.eq.s32.totalorder %s12, 0
    %p84 = por %p82, %p83
    %p85 = scmp.ne.s32.totalorder %s74, %s77
    %p86 = scmp.eq.s32.totalorder %s17, 1
    %p87 = por %p85, %p86
    %p88 = scmp.ne.s32.totalorder %s77, %s78
    %p89 = scmp.eq.s32.totalorder %s17, 0
    %p90 = por %p88, %p89
    %p91 = scmp.ne.s32.totalorder %s77, %s78
    %p92 = scmp.eq.s32.totalorder %s18, 1
    %p93 = por %p91, %p92
    %p95 = scmp.ne.s32.totalorder %s78, %s94
    %p96 = scmp.eq.s32.totalorder %s18, 0
    %p97 = por %p95, %p96
    %s98 = ssub.s32 %s12, %s19
    %p99 = scmp.eq.s32.totalorder %s98, 0
    %s101 = sadd.s32 %s100, 1
    %s102 = scalar_select %p99, %s100, %s101
    %p105 = pneg %p99
    %p106 = scmp.eq.s32.totalorder %s12, 1
    %p107 = por %p105, %p106
    %p108 = scmp.ne.s32.totalorder %s100, %s103
    %p109 = scmp.eq.s32.totalorder %s12, 0
    %p110 = por %p108, %p109
    %p111 = scmp.ne.s32.totalorder %s100, %s103
    %p112 = scmp.eq.s32.totalorder %s17, 1
    %p113 = por %p111, %p112
    %p114 = scmp.ne.s32.totalorder %s103, %s104
    %p115 = scmp.eq.s32.totalorder %s17, 0
    %p116 = por %p114, %p115
    %p117 = scmp.ne.s32.totalorder %s103, %s104
    %p118 = scmp.eq.s32.totalorder %s18, 1
    %p119 = por %p117, %p118
    %p121 = scmp.ne.s32.totalorder %s104, %s120
    %p122 = scmp.eq.s32.totalorder %s18, 0
    %p123 = por %p121, %p122
    %s124 = ssub.s32 %s12, %s19
    %p125 = scmp.eq.s32.totalorder %s124, 0
    %s127 = sadd.s32 %s126, 1
    %s128 = scalar_select %p125, %s126, %s127
    %p131 = pneg %p125
    %p132 = scmp.eq.s32.totalorder %s12, 1
    %p133 = por %p131, %p132
    %p134 = scmp.ne.s32.totalorder %s126, %s129
    %p135 = scmp.eq.s32.totalorder %s12, 0
    %p136 = por %p134, %p135
    %p137 = scmp.ne.s32.totalorder %s126, %s129
    %p138 = scmp.eq.s32.totalorder %s17, 1
    %p139 = por %p137, %p138
    %p140 = scmp.ne.s32.totalorder %s129, %s130
    %p141 = scmp.eq.s32.totalorder %s17, 0
    %p142 = por %p140, %p141
    %p143 = scmp.ne.s32.totalorder %s129, %s130
    %p144 = scmp.eq.s32.totalorder %s18, 1
    %p145 = por %p143, %p144
    %p147 = scmp.ne.s32.totalorder %s130, %s146
    %p148 = scmp.eq.s32.totalorder %s18, 0
    %p149 = por %p147, %p148
    %s150 = ssub.s32 %s12, %s19
    %p151 = scmp.eq.s32.totalorder %s150, 0
    %s153 = sadd.s32 %s152, 1
    %s154 = scalar_select %p151, %s152, %s153
    %p157 = pneg %p151
    %p158 = scmp.eq.s32.totalorder %s12, 1
    %p159 = por %p157, %p158
    %p160 = scmp.ne.s32.totalorder %s152, %s155
    %p161 = scmp.eq.s32.totalorder %s12, 0
    %p162 = por %p160, %p161
    %p163 = scmp.ne.s32.totalorder %s152, %s155
    %p164 = scmp.eq.s32.totalorder %s17, 1
    %p165 = por %p163, %p164
    %p166 = scmp.ne.s32.totalorder %s155, %s156
    %p167 = scmp.eq.s32.totalorder %s17, 0
    %p168 = por %p166, %p167
    %p169 = scmp.ne.s32.totalorder %s155, %s156
    %p170 = scmp.eq.s32.totalorder %s18, 1
    %p171 = por %p169, %p170
    %p173 = scmp.ne.s32.totalorder %s156, %s172
    %p174 = scmp.eq.s32.totalorder %s18, 0
    %p175 = por %p173, %p174
    %p176 = scmp.le.s32.totalorder 1, %s12
    %p177 = scmp.lt.s32.totalorder %s12, 3
    %p178 = pnand %p176, %p177
    %p179 = pneg %p178
    // Predicated region
    $region9: #{gen_gauss_loss.1} parent=5 // pred_check
      _
    $region10: #{gen_gauss_loss.1} parent=5 // pred_check_branch
      %181 = sbr.rel (%p178) target = $region12
    $region11: #{gen_gauss_loss.1} parent=5 // pred_region
      %s182 = ssub.s32 %s12, 1
    $region12: #{gen_gauss_loss.1} parent=5 // pred_fallthru
      _
    %p183 = scmp.lt.s32.totalorder %s12, 2
    // Predicated region
    $region13: #{gen_gauss_loss.1} parent=5 // pred_check
      %p184 = pneg %p183
    $region14: #{gen_gauss_loss.1} parent=5 // pred_check_branch
      %186 = sbr.rel (%p184) target = $region16
    $region15: #{gen_gauss_loss.1} parent=5 // pred_region
      // Predicated region
      $region17: #{gen_gauss_loss.1} parent=15 // pred_check
        %p187 = pneg %p32
      $region18: #{gen_gauss_loss.1} parent=15 // pred_check_branch
        %189 = sbr.rel (%p187) target = $region20
      $region19: #{gen_gauss_loss.1} parent=15 // pred_region
        %p190 = scmp.lt.s32.totalorder %s12, 1
        %s191 = scalar_select %p190, %s12, 1
        %s192 = smul.addr %s191, 8
        %s193 = scalar_lea.vmem %s0, %s192
      $region20: #{gen_gauss_loss.1} parent=15 // pred_fallthru
        _
      // Predicated region
      $region21: #{gen_gauss_loss.1} parent=15 // pred_check
        %p194 = pneg %p58
      $region22: #{gen_gauss_loss.1} parent=15 // pred_check_branch
        %196 = sbr.rel (%p194) target = $region24
      $region23: #{gen_gauss_loss.1} parent=15 // pred_region
        %p197 = scmp.lt.s32.totalorder %s12, 1
        %s198 = scalar_select %p197, %s12, 1
        %s199 = smul.addr %s198, 8
        %s200 = scalar_lea.vmem %s1, %s199
      $region24: #{gen_gauss_loss.1} parent=15 // pred_fallthru
        _
      // Predicated region
      $region25: #{gen_gauss_loss.1} parent=15 // pred_check
        %p201 = pneg %p84
      $region26: #{gen_gauss_loss.1} parent=15 // pred_check_branch
        %203 = sbr.rel (%p201) target = $region28
      $region27: #{gen_gauss_loss.1} parent=15 // pred_region
        %p204 = scmp.lt.s32.totalorder %s12, 1
        %s205 = scalar_select %p204, %s12, 1
        %s206 = smul.addr %s205, 8
        %s207 = scalar_lea.vmem %s2, %s206
      $region28: #{gen_gauss_loss.1} parent=15 // pred_fallthru
        _
      // Predicated region
      $region29: #{gen_gauss_loss.1} parent=15 // pred_check
        %p208 = pneg %p110
      $region30: #{gen_gauss_loss.1} parent=15 // pred_check_branch
        %210 = sbr.rel (%p208) target = $region32
      $region31: #{gen_gauss_loss.1} parent=15 // pred_region
        %p211 = scmp.lt.s32.totalorder %s12, 1
        %s212 = scalar_select %p211, %s12, 1
        %s213 = smul.addr %s212, 8
        %s214 = scalar_lea.vmem %s3, %s213
      $region32: #{gen_gauss_loss.1} parent=15 // pred_fallthru
        _
    $region16: #{gen_gauss_loss.1} parent=5 // pred_fallthru
      _
    %p215 = scmp.le.s32.totalorder 1, %s12
    %p216 = scmp.lt.s32.totalorder %s12, 3
    %p217 = pnand %p215, %p216
    %p218 = pneg %p217
    // Predicated region
    $region33: #{gen_gauss_loss.1} parent=5 // pred_check
      _
    $region34: #{gen_gauss_loss.1} parent=5 // pred_check_branch
      %220 = sbr.rel (%p217) target = $region36
    $region35: #{gen_gauss_loss.1} parent=5 // pred_region
      %s221 = ssub.s32 %s12, 1
      %p222 = scmp.lt.s32.totalorder %s17, 1
      %s223 = scalar_select %p222, %s17, 1
      %s224 = smul.addr %s223, 8
      %s225 = scalar_lea.vmem %s0, %s224
      %p226 = pneg %p38
      %p227 = pneg %p35
      %p228 = scmp.lt.s32.totalorder %s17, 1
      %s229 = scalar_select %p228, %s17, 1
      %s230 = smul.addr %s229, 8
      %s231 = scalar_lea.vmem %s1, %s230
      %p232 = pneg %p64
      %p233 = pneg %p61
      %p234 = scmp.lt.s32.totalorder %s17, 1
      %s235 = scalar_select %p234, %s17, 1
      %s236 = smul.addr %s235, 8
      %s237 = scalar_lea.vmem %s2, %s236
      %p238 = pneg %p90
      %p239 = pneg %p87
      %p240 = scmp.lt.s32.totalorder %s17, 1
      %s241 = scalar_select %p240, %s17, 1
      %s242 = smul.addr %s241, 8
      %s243 = scalar_lea.vmem %s3, %s242
      %p244 = pneg %p116
      %p245 = pneg %p113
      %p246 = pneg %p142
      %p247 = pneg %p139
      %p248 = scmp.lt.s32.totalorder %s17, 1
      %s249 = scalar_select %p248, %s17, 1
      %s250 = smul.addr %s249, 8
      %s251 = scalar_lea.vmem %s4, %s250
      %p252 = pneg %p168
      %p253 = pneg %p165
      %p254 = scmp.lt.s32.totalorder %s17, 1
      %s255 = scalar_select %p254, %s17, 1
      %s256 = smul.addr %s255, 8
      %s257 = scalar_lea.vmem %s5, %s256
      %p258 = scmp.lt.s32.totalorder %s17, 1
      %s259 = scalar_select %p258, %s17, 1
      %s260 = smul.addr %s259, 8
      %s261 = scalar_lea.vmem %s0, %s260
      %p262 = scmp.lt.s32.totalorder %s17, 1
      %s263 = scalar_select %p262, %s17, 1
      %s264 = smul.addr %s263, 8
      %s265 = scalar_lea.vmem %s1, %s264
      %p266 = scmp.lt.s32.totalorder %s17, 1
      %s267 = scalar_select %p266, %s17, 1
      %s268 = smul.addr %s267, 8
      %s269 = scalar_lea.vmem %s2, %s268
      %p270 = scmp.lt.s32.totalorder %s17, 1
      %s271 = scalar_select %p270, %s17, 1
      %s272 = smul.addr %s271, 8
      %s273 = scalar_lea.vmem %s3, %s272
      %p274 = scmp.lt.s32.totalorder %s17, 1
      %s275 = scalar_select %p274, %s17, 1
      %s276 = smul.addr %s275, 8
      %s277 = scalar_lea.vmem %s4, %s276
      %p278 = scmp.lt.s32.totalorder %s17, 1
      %s279 = scalar_select %p278, %s17, 1
      %s280 = smul.addr %s279, 8
      %s281 = scalar_lea.vmem %s5, %s280
      %v282 = vld [vmem:[%s265] sm:$0xff]
      %v283 = vadd.f32 %v282, 0.0001
      %v284 = vld [vmem:[%s269] sm:$0xff]
      %v285 = vadd.f32 %v284, 0.0001
      %v286 = vld [vmem:[%s261] sm:$0xff]
      %v287 = vld [vmem:[%s273] sm:$0xff]
      %v288 = vsub.f32 %v286, %v287
      %v289 = vand.u32 2147483647, %v288
      %v290 = vmul.f32 %v289, %v283
      %v291 = vmul.f32 %v290, %v285
      %v292 = vmax.f32 %v291, 0.0001
      %v293 = vmin.f32 %v292, 1000.0
      %v294 = vrcp.pop %v285
      %v295 = vmul.f32 1.0, %v294
      %v296 = vadd.f32 %v295, 5.5
      %v297 = vmul.f32 %v295, 2.5066283
      %v298 = vadd.f32 %v297, 83.86761
      %v299 = vmul.f32 %v298, %v295
      %v300 = vadd.f32 %v299, 1168.9265
      %v301 = vmul.f32 %v300, %v295
      %v302 = vadd.f32 %v301, 8687.245
      %v303 = vmul.f32 %v302, %v295
      %v304 = vadd.f32 %v303, 36308.297
      %v305 = vmul.f32 %v304, %v295
      %v306 = vadd.f32 %v305, 80916.625
      %v307 = vmul.f32 %v306, %v295
      %v308 = vadd.f32 %v307, 75122.63
      %v309 = vadd.f32 %v295, 21.0
      %v310 = vmul.f32 %v309, %v295
      %v311 = vadd.f32 %v310, 175.0
      %v312 = vmul.f32 %v311, %v295
      %v313 = vadd.f32 %v312, 735.0
      %v314 = vmul.f32 %v313, %v295
      %v315 = vadd.f32 %v314, 1624.0
      %v316 = vmul.f32 %v315, %v295
      %v317 = vadd.f32 %v316, 1764.0
      %v318 = vmul.f32 %v317, %v295
      %v319 = vadd.f32 %v318, 720.0
      %v320 = vmul.f32 %v319, %v295
      %v321 = vadd.f32 %v320, 0.0
      %v322 = vrcp.pop %v321
      %v323 = vmul.f32 %v308, %v322
      %v324 = vadd.f32 %v295, 0.5
      %v325 = vlog2.pop %v296
      %v326 = vmul.f32 %v325, 0.6931472
      %v327 = vmul.f32 %v324, %v326
      %v328 = vsub.f32 %v327, %v296
      %v329 = vlog2.pop %v323
      %v330 = vmul.f32 %v329, 0.6931472
      %v331 = vadd.f32 %v328, %v330
      %v332 = vmul.f32 %v295, 3.0
      %v333 = vadd.f32 %v332, 5.5
      %v334 = vmul.f32 %v332, 2.5066283
      %v335 = vadd.f32 %v334, 83.86761
      %v336 = vmul.f32 %v335, %v332
      %v337 = vadd.f32 %v336, 1168.9265
      %v338 = vmul.f32 %v337, %v332
      %v339 = vadd.f32 %v338, 8687.245
      %v340 = vmul.f32 %v339, %v332
      %v341 = vadd.f32 %v340, 36308.297
      %v342 = vmul.f32 %v341, %v332
      %v343 = vadd.f32 %v342, 80916.625
      %v344 = vmul.f32 %v343, %v332
      %v345 = vadd.f32 %v344, 75122.63
      %v346 = vadd.f32 %v332, 21.0
      %v347 = vmul.f32 %v346, %v332
      %v348 = vadd.f32 %v347, 175.0
      %v349 = vmul.f32 %v348, %v332
      %v350 = vadd.f32 %v349, 735.0
      %v351 = vmul.f32 %v350, %v332
      %v352 = vadd.f32 %v351, 1624.0
      %v353 = vmul.f32 %v352, %v332
      %v354 = vadd.f32 %v353, 1764.0
      %v355 = vmul.f32 %v354, %v332
      %v356 = vadd.f32 %v355, 720.0
      %v357 = vmul.f32 %v356, %v332
      %v358 = vadd.f32 %v357, 0.0
      %v359 = vrcp.pop %v358
      %v360 = vmul.f32 %v345, %v359
      %v361 = vadd.f32 %v332, 0.5
      %v362 = vlog2.pop %v333
      %v363 = vmul.f32 %v362, 0.6931472
      %v364 = vmul.f32 %v361, %v363
      %v365 = vsub.f32 %v364, %v333
      %v366 = vlog2.pop %v360
      %v367 = vmul.f32 %v366, 0.6931472
      %v368 = vadd.f32 %v365, %v367
      %v369 = vmul.f32 %v283, %v283
      %v370 = vrcp.pop %v331
      %v371 = vmul.f32 %v368, %v370
      %v372 = vmul.f32 %v371, 1.442695
      %v373 = vpow.pop %v372
      %v374 = vmul.f32 %v369, %v373
      %375 = vst [vmem:[%s277] sm:$0xff] %v374
      %v376 = vadd.f32 %v293, %v331
      %v377 = vmul.f32 %v283, %v285
      %v378 = vlog2.pop %v377
      %v379 = vmul.f32 %v378, 0.6931472
      %v380 = vsub.f32 %v376, %v379
      %v381 = vadd.f32 %v380, 0.0
      %v382 = vadd.f32 %v381, 0.0
      %383 = vst [vmem:[%s281] sm:$0xff] %v382
      %p384 = scmp.lt.s32.totalorder %s17, 1
      %s385 = scalar_select %p384, %s17, 1
      %s386 = smul.addr %s385, 8
      %s387 = scalar_lea.vmem %s4, %s386
      %p388 = scmp.lt.s32.totalorder %s17, 1
      %s389 = scalar_select %p388, %s17, 1
      %s390 = smul.addr %s389, 8
      %s391 = scalar_lea.vmem %s5, %s390
      // Predicated region
      $region37: #{gen_gauss_loss.1} parent=35 // pred_check
        %p392 = pneg %p139
      $region38: #{gen_gauss_loss.1} parent=35 // pred_check_branch
        %394 = sbr.rel (%p392) target = $region40
      $region39: #{gen_gauss_loss.1} parent=35 // pred_region
        _
      $region40: #{gen_gauss_loss.1} parent=35 // pred_fallthru
        _
      // Predicated region
      $region41: #{gen_gauss_loss.1} parent=35 // pred_check
        %p395 = pneg %p165
      $region42: #{gen_gauss_loss.1} parent=35 // pred_check_branch
        %397 = sbr.rel (%p395) target = $region44
      $region43: #{gen_gauss_loss.1} parent=35 // pred_region
        _
      $region44: #{gen_gauss_loss.1} parent=35 // pred_fallthru
        _
    $region36: #{gen_gauss_loss.1} parent=5 // pred_fallthru
      _
    %p398 = scmp.le.s32.totalorder 2, %s12
    // Predicated region
    $region45: #{gen_gauss_loss.1} parent=5 // pred_check
      %p399 = pneg %p398
    $region46: #{gen_gauss_loss.1} parent=5 // pred_check_branch
      %401 = sbr.rel (%p399) target = $region48
    $region47: #{gen_gauss_loss.1} parent=5 // pred_region
      %s402 = ssub.s32 %s12, 2
      // Predicated region
      $region49: #{gen_gauss_loss.1} parent=47 // pred_check
        %p403 = pneg %p145
      $region50: #{gen_gauss_loss.1} parent=47 // pred_check_branch
        %405 = sbr.rel (%p403) target = $region52
      $region51: #{gen_gauss_loss.1} parent=47 // pred_region
        %p406 = scmp.lt.s32.totalorder %s18, 1
        %s407 = scalar_select %p406, %s18, 1
        %s408 = smul.addr %s407, 8
        %s409 = scalar_lea.vmem %s4, %s408
      $region52: #{gen_gauss_loss.1} parent=47 // pred_fallthru
        _
      // Predicated region
      $region53: #{gen_gauss_loss.1} parent=47 // pred_check
        %p410 = pneg %p171
      $region54: #{gen_gauss_loss.1} parent=47 // pred_check_branch
        %412 = sbr.rel (%p410) target = $region56
      $region55: #{gen_gauss_loss.1} parent=47 // pred_region
        %p413 = scmp.lt.s32.totalorder %s18, 1
        %s414 = scalar_select %p413, %s18, 1
        %s415 = smul.addr %s414, 8
        %s416 = scalar_lea.vmem %s5, %s415
      $region56: #{gen_gauss_loss.1} parent=47 // pred_fallthru
        _
    $region48: #{gen_gauss_loss.1} parent=5 // pred_fallthru
      _
  $region6: #{gen_gauss_loss.1} parent=0 // loop_footer
    %s16 = sadd.s32 1, %s12
  $region7: #{gen_gauss_loss.1} parent=0 // loop_footer_branch
    %11 = sbr.rel target = $region3
  $region8: #{gen_gauss_loss.1} parent=0 // loop_exit
    _

</llo_original>
